<compile_context>
chip_gen: v7x
topology: tpu7x:2x2x1
jax: 0.10.0
libtpu: 0.0.40
codegen_flags: <defaults>
</compile_context>

<pallas_src>
import functools
import math
from typing import NamedTuple, Tuple

import jax
import jax.numpy as jnp
from jax.experimental import pallas as pl
from jax.experimental.pallas import tpu as pltpu


# ---------------------------------------------------------------------------
# Static geometry (mirrors BEV2RV.__init__): BEV pixel coords for each RV pixel
# ---------------------------------------------------------------------------
def _sample_coords(bev_size, rv_size, sensor_h=1.73, max_range=50.0,
                   fov_h=(-math.pi, math.pi),
                   fov_v=(-25 * math.pi / 180, 3 * math.pi / 180),
                   range_xy=(-50.0, 50.0, -50.0, 50.0)):
    """Returns (ix, iy): flat (N,) BEV pixel coordinates for every RV pixel."""
    H_b, W_b = bev_size
    H_r, W_r = rv_size
    xmin, xmax, ymin, ymax = range_xy

    phi = jnp.linspace(fov_v[1], fov_v[0], H_r, dtype=jnp.float32)[:, None]
    theta = jnp.linspace(fov_h[0], fov_h[1], W_r, dtype=jnp.float32)[None, :]
    phi = jnp.broadcast_to(phi, (H_r, W_r))
    theta = jnp.broadcast_to(theta, (H_r, W_r))

    sin_phi = jnp.clip(jnp.sin(phi), -1.0, -0.017)
    r = jnp.minimum(sensor_h / -sin_phi, max_range)
    x = r * jnp.cos(phi) * jnp.cos(theta)
    y = r * jnp.cos(phi) * jnp.sin(theta)

    x_pix = (x - xmin) / (xmax - xmin) * (W_b - 1)
    y_pix = (ymax - y) / (ymax - ymin) * (H_b - 1)
    # grid_sample(align_corners=True): normalize to [-1, 1] then unnormalize is
    # the identity, so x_pix / y_pix are the sampled pixel coordinates.
    return x_pix.reshape(-1), y_pix.reshape(-1)


def _interp_factor(coords, size):
    """(size, N) 1-D linear-interp factor matrix (2 nonzeros per column).

    Out-of-range corners get weight 0 (grid_sample padding_mode='zeros').
    """
    n = coords.shape[0]
    cols = jnp.arange(n)
    c0 = jnp.floor(coords)
    frac = coords - c0
    A = jnp.zeros((size, n), dtype=jnp.float32)
    for c, w in ((c0, 1.0 - frac), (c0 + 1.0, frac)):
        valid = (c >= 0) & (c <= size - 1)
        idx = jnp.clip(c, 0, size - 1).astype(jnp.int32)
        A = A.at[idx, cols].add(jnp.where(valid, w, 0.0))
    return A


def grid_sample_ref(bev_feat, rv_size, **geom_kwargs):
    """Pure-JAX f32 bilinear grid_sample reference (zeros padding, align_corners=True)."""
    B, C, H_b, W_b = bev_feat.shape
    H_r, W_r = rv_size
    ix, iy = _sample_coords((H_b, W_b), rv_size, **geom_kwargs)
    x0 = jnp.floor(ix)
    y0 = jnp.floor(iy)
    fx = ix - x0
    fy = iy - y0
    corners = ((x0, y0, (1 - fx) * (1 - fy)),
               (x0 + 1, y0, fx * (1 - fy)),
               (x0, y0 + 1, (1 - fx) * fy),
               (x0 + 1, y0 + 1, fx * fy))
    out = jnp.zeros((B, C, H_r * W_r), jnp.float32)
    for xc, yc, w in corners:
        valid = (xc >= 0) & (xc <= W_b - 1) & (yc >= 0) & (yc <= H_b - 1)
        xi = jnp.clip(xc, 0, W_b - 1).astype(jnp.int32)
        yi = jnp.clip(yc, 0, H_b - 1).astype(jnp.int32)
        out = out + jnp.where(valid, w, 0.0) * bev_feat[:, :, yi, xi]
    return out.reshape(B, C, H_r, W_r)


# ---------------------------------------------------------------------------
# Tile planning (all static Python ints)
# ---------------------------------------------------------------------------
def _round_up(x, m):
    return (x + m - 1) // m * m


def _lcm(a, b):
    return a * b // math.gcd(a, b)


def _largest_divisor(total, cap):
    d = max(1, min(total, cap))
    while total % d:
        d -= 1
    return d


def _vmem_plan():
    """Generation-aware (tile budget, scoped VMEM limit, tn cap in 128-blocks)."""
    try:
        kind = jax.devices()[0].device_kind.lower()
    except Exception:  # pragma: no cover - defensive
        kind = ""
    if "v5" in kind or "v6" in kind:
        # 128 MiB physical VMEM: go big (review: raise toward 64-96 MiB scoped).
        return 64 * 1024 * 1024, 96 * 1024 * 1024, 16
    # v7x (64 MiB physical per TensorCore) or unknown generation: conservative.
    return 20 * 1024 * 1024, 48 * 1024 * 1024, 8


def _tile_vmem_bytes(m_pad, wb_pad, th, tn):
    tk = th * wb_pad
    return (2 * 2 * m_pad * tk        # double-buffered bf16 BEV block
            + 2 * 4 * th * tn         # double-buffered f32 Ay block
            + 2 * 4 * wb_pad * tn     # double-buffered f32 Ax block
            + 2 * 4 * m_pad * tn      # f32 output block
            + 10 * tk * tn)           # S-tile build temporaries (f32 + bf16)


def _choose_tiles(m_pad, H_b, wb_pad, N, budget, tn_cap_blocks):
    n_pad = _round_up(N, 128)
    nb_total = n_pad // 128

    # tn: multiple of 128 dividing n_pad; keep >= 2 "parallel" j blocks when N
    # allows, so the grid can shard across v7x's two TensorCores.
    cap = tn_cap_blocks
    if nb_total >= 2:
        cap = max(1, min(cap, nb_total // 2))
    tn = 128 * _largest_divisor(nb_total, cap)

    # K is tiled by whole BEV rows: tk = th * wb_pad.  th must keep the BEV
    # block's last dim a multiple of 128 and the Ay block sublane-aligned,
    # unless th covers all of H_b (full-dim blocks are exempt).
    step = _lcm(8, 128 // math.gcd(wb_pad, 128))
    th = H_b                                   # preferred: reduction in one step
    while _tile_vmem_bytes(m_pad, wb_pad, th, tn) > budget and th > step:
        th = max(step, ((th // 2) // step) * step)
    while _tile_vmem_bytes(m_pad, wb_pad, th, tn) > budget and tn > 128:
        tn = 128 * _largest_divisor(nb_total, max(1, (tn // 128) // 2))
    return th, tn, n_pad


class BEV2RVConfig(NamedTuple):
    bev_size: Tuple[int, int]
    m_pad: int
    th: int
    tn: int
    wb_pad: int
    hb_pad: int
    vmem_limit: int


def prepare_bev2rv(bev_size, rv_size, num_rows, **geom_kwargs):
    """One-time static setup: interpolation factor matrices + tile plan."""
    H_b, W_b = bev_size
    H_r, W_r = rv_size
    N = H_r * W_r

    ix, iy = _sample_coords(bev_size, rv_size, **geom_kwargs)
    ay_full = _interp_factor(iy, H_b)          # (H_b, N) f32
    ax_full = _interp_factor(ix, W_b)          # (W_b, N) f32

    m_pad = _round_up(max(num_rows, 1), 16)
    wb_pad = _round_up(W_b, 8)
    budget, vmem_limit, tn_cap_blocks = _vmem_plan()
    th, tn, n_pad = _choose_tiles(m_pad, H_b, wb_pad, N, budget, tn_cap_blocks)
    hb_pad = _round_up(H_b, th)

    ay = jnp.zeros((hb_pad, n_pad), jnp.float32).at[:H_b, :N].set(ay_full)
    ax = jnp.zeros((wb_pad, n_pad), jnp.float32).at[:W_b, :N].set(ax_full)
    cfg = BEV2RVConfig((H_b, W_b), m_pad, th, tn, wb_pad, hb_pad, vmem_limit)
    return ay, ax, cfg


# ---------------------------------------------------------------------------
# Pallas kernel: per (j, k) tile, rebuild the sparse-structured S tile in VMEM
# from the tiny factor matrices and do one MXU matmul, accumulating f32
# directly into the resident output block.
#   grid = (n_pad // tn, hb_pad // th)      axes: ("parallel", "arbitrary")
# ---------------------------------------------------------------------------
def _bev2rv_kernel(a_ref, ay_ref, ax_ref, o_ref):
    k = pl.program_id(1)

    @pl.when(k == 0)
    def _():
        o_ref[...] = jnp.zeros_like(o_ref)

    ay = ay_ref[...]                      # (th, tn)  f32
    ax = ax_ref[...]                      # (wb, tn)  f32
    th, tn = ay.shape
    wb = ax.shape[0]

    # Bilinear weights are separable: S[(y, x), n] = Ay[y, n] * Ax[x, n].
    # One VPU broadcast-multiply builds the (tk, tn) tile; wb is a multiple of
    # 8 so the collapse into the sublane dim is a free relayout.
    s = (ay[:, None, :] * ax[None, :, :]).reshape(th * wb, tn)

    o_ref[...] += jnp.dot(a_ref[...], s.astype(jnp.bfloat16),
                          preferred_element_type=jnp.float32)


def _pallas_bev2rv(a, ay, ax, *, th, tn, vmem_limit):
    """a: (m_pad, K_pad) bf16, ay: (hb_pad, n_pad) f32, ax: (wb_pad, n_pad) f32."""
    m_pad, k_pad = a.shape
    hb_pad, n_pad = ay.shape
    wb_pad, n_pad2 = ax.shape
    assert n_pad == n_pad2 and k_pad == hb_pad * wb_pad
    assert hb_pad % th == 0 and n_pad % tn == 0 and m_pad % 8 == 0

    tk = th * wb_pad
    nb = n_pad // tn
    kb = hb_pad // th
    grid = (nb, kb)

    cost = pl.CostEstimate(
        flops=2 * m_pad * k_pad * n_pad + k_pad * n_pad,
        transcendentals=0,
        bytes_accessed=(
            m_pad * k_pad * 2 * (nb if kb > 1 else 1)  # BEV re-streamed per j when K tiled
            + hb_pad * n_pad * 4                       # Ay
            + wb_pad * n_pad * 4 * kb                  # Ax re-read per k block
            + m_pad * n_pad * 4),                      # output
    )

    return pl.pallas_call(
        _bev2rv_kernel,
        out_shape=jax.ShapeDtypeStruct((m_pad, n_pad), jnp.float32),
        grid_spec=pltpu.PrefetchScalarGridSpec(
            num_scalar_prefetch=0,
            grid=grid,
            in_specs=[
                pl.BlockSpec((m_pad, tk), lambda j, k: (0, k)),
                pl.BlockSpec((th, tn), lambda j, k: (k, j)),
                pl.BlockSpec((wb_pad, tn), lambda j, k: (0, j)),
            ],
            out_specs=pl.BlockSpec((m_pad, tn), lambda j, k: (0, j)),
        ),
        compiler_params=pltpu.CompilerParams(
            dimension_semantics=("parallel", "arbitrary"),
            vmem_limit_bytes=vmem_limit,
        ),
        cost_estimate=cost,
    )(a, ay, ax)


# ---------------------------------------------------------------------------
# BEV2RV forward
# ---------------------------------------------------------------------------
@functools.partial(jax.jit, static_argnames=("rv_size", "cfg"))
def bev2rv_forward(bev_feat, ay, ax, *, rv_size, cfg):
    """bev_feat: (B, C, H_b, W_b) f32 -> (B, C, H_r, W_r) f32."""
    B, C, H_b, W_b = bev_feat.shape
    H_r, W_r = rv_size
    M, N = B * C, H_r * W_r

    if (H_b, W_b) != tuple(cfg.bev_size):
        raise ValueError(f"BEV2RV prepared for BEV size {cfg.bev_size}, got {(H_b, W_b)}")
    if M > cfg.m_pad:
        raise ValueError(f"BEV2RV prepared for at most {cfg.m_pad} rows (B*C), got {M}; "
                         f"re-run prepare_bev2rv with num_rows >= {M}")

    # Layout plumbing lives in the wrapper: pad rows, BEV height/width to the
    # tiled sizes, flatten, and cast to bf16 (f32 accumulation in the kernel).
    a = bev_feat.reshape(M, H_b, W_b)
    a = jnp.pad(a, ((0, cfg.m_pad - M),
                    (0, cfg.hb_pad - H_b),
                    (0, cfg.wb_pad - W_b)))
    a = a.reshape(cfg.m_pad, cfg.hb_pad * cfg.wb_pad).astype(jnp.bfloat16)

    out = _pallas_bev2rv(a, ay, ax, th=cfg.th, tn=cfg.tn,
                         vmem_limit=cfg.vmem_limit)       # (m_pad, n_pad) f32
    return out[:M, :N].reshape(B, C, H_r, W_r)


if __name__ == "__main__":
    # Small shapes consistent with the module's forward.
    B, C = 2, 4
    bev_size = (16, 16)   # (H_b, W_b)
    rv_size = (8, 16)     # (H_r, W_r)

    key = jax.random.PRNGKey(0)
    bev_feat = jax.random.normal(key, (B, C, *bev_size), dtype=jnp.float32)

    # One-time static setup (geometry only): factor matrices + tile plan.
    ay, ax, cfg = prepare_bev2rv(bev_size, rv_size, num_rows=B * C)

    out = bev2rv_forward(bev_feat, ay, ax, rv_size=rv_size, cfg=cfg)
    out = jax.block_until_ready(out)

    assert out.shape == (B, C, *rv_size), out.shape
    assert bool(jnp.all(jnp.isfinite(out)))

    # Check against a pure-f32 grid_sample reference (review: do not compare
    # only against a bf16-quantized matmul).  Kernel operands are bf16 with f32
    # accumulation; each output mixes <= 4 BEV values with weights in [0, 1],
    # so the quantization error is tightly bounded.
    ref = grid_sample_ref(bev_feat, rv_size)
    max_err = float(jnp.max(jnp.abs(out - ref)))
    assert max_err < 5e-2, f"max abs error vs f32 grid_sample reference: {max_err}"

    print("KERNEL_OK")
</pallas_src>

<mosaic_0001>
module attributes {stable_mosaic.version = 11 : i64} {
  func.func @_bev2rv_kernel(%arg0: i32, %arg1: i32, %arg2: memref<16x256xbf16, #tpu.memory_space<vmem>>, %arg3: memref<16x128xf32, #tpu.memory_space<vmem>>, %arg4: memref<16x128xf32, #tpu.memory_space<vmem>>, %arg5: memref<16x128xf32, #tpu.memory_space<vmem>>) attributes {dimension_semantics = [#tpu.dimension_semantics<parallel>, #tpu.dimension_semantics<arbitrary>], iteration_bounds = array<i64: 1, 1>, scalar_prefetch = 0 : i64, scratch_operands = 0 : i64, tpu.core_type = #tpu.core_type<tc>, window_params = [{transform_indices = @transform_0, window_bounds = array<i64: 16, 256>}, {transform_indices = @transform_1, window_bounds = array<i64: 16, 128>}, {transform_indices = @transform_2, window_bounds = array<i64: 16, 128>}, {transform_indices = @transform_3, window_bounds = array<i64: 16, 128>}]} {
    %c0_i32 = arith.constant 0 : i32
    %0 = arith.cmpi eq, %arg1, %c0_i32 : i32
    %1 = arith.extui %0 : i1 to i32
    %c0_i32_0 = arith.constant 0 : i32
    %2 = arith.cmpi ne, %1, %c0_i32_0 : i32
    scf.if %2 {
      %cst_10 = arith.constant 0.000000e+00 : f32
      %17 = vector.broadcast %cst_10 : f32 to vector<16x128xf32>
      %c0_11 = arith.constant 0 : index
      %c0_12 = arith.constant 0 : index
      %18 = vector.load %arg5[%c0_11, %c0_12] : memref<16x128xf32, #tpu.memory_space<vmem>>, vector<16x128xf32>
      tpu.vector_store %arg5[%c0_11, %c0_12], %17 {strides = array<i32>} : memref<16x128xf32, #tpu.memory_space<vmem>>, vector<16x128xf32>,
    } else {
    }
    %c0 = arith.constant 0 : index
    %c0_1 = arith.constant 0 : index
    %3 = vector.load %arg3[%c0, %c0_1] : memref<16x128xf32, #tpu.memory_space<vmem>>, vector<16x128xf32>
    %c0_2 = arith.constant 0 : index
    %c0_3 = arith.constant 0 : index
    %4 = vector.load %arg4[%c0_2, %c0_3] : memref<16x128xf32, #tpu.memory_space<vmem>>, vector<16x128xf32>
    %5 = vector.shape_cast %3 : vector<16x128xf32> to vector<16x1x128xf32>
    %6 = vector.shape_cast %4 : vector<16x128xf32> to vector<1x16x128xf32>
    %7 = vector.broadcast %5 : vector<16x1x128xf32> to vector<16x16x128xf32>
    %8 = vector.broadcast %6 : vector<1x16x128xf32> to vector<16x16x128xf32>
    %9 = arith.mulf %7, %8 : vector<16x16x128xf32>
    %10 = vector.shape_cast %9 : vector<16x16x128xf32> to vector<256x128xf32>
    %c0_4 = arith.constant 0 : index
    %c0_5 = arith.constant 0 : index
    %11 = vector.load %arg5[%c0_4, %c0_5] : memref<16x128xf32, #tpu.memory_space<vmem>>, vector<16x128xf32>
    %c0_6 = arith.constant 0 : index
    %c0_7 = arith.constant 0 : index
    %12 = vector.load %arg2[%c0_6, %c0_7] : memref<16x256xbf16, #tpu.memory_space<vmem>>, vector<16x256xbf16>
    %13 = arith.truncf %10 : vector<256x128xf32> to vector<256x128xbf16>
    %cst = arith.constant dense<0.000000e+00> : vector<16x128xf32>
    %14 = tpu.matmul %12, %13, %cst {dimension_numbers = #tpu.dot_dimension_numbers<[1], [0], [0], [1], [0, 0, 1, 1], [], []>} : vector<16x256xbf16>, vector<256x128xbf16>, vector<16x128xf32> -> vector<16x128xf32>
    %15 = arith.addf %11, %14 : vector<16x128xf32>
    %c0_8 = arith.constant 0 : index
    %c0_9 = arith.constant 0 : index
    %16 = vector.load %arg5[%c0_8, %c0_9] : memref<16x128xf32, #tpu.memory_space<vmem>>, vector<16x128xf32>
    tpu.vector_store %arg5[%c0_8, %c0_9], %15 {strides = array<i32>} : memref<16x128xf32, #tpu.memory_space<vmem>>, vector<16x128xf32>,
    return
  }
  func.func @transform_0(%arg0: i32, %arg1: i32) -> (i32, i32) {
    %c0_i32 = arith.constant 0 : i32
    %c0_i32_0 = arith.constant 0 : i32
    return %c0_i32, %arg1 : i32, i32
  }
  func.func @transform_1(%arg0: i32, %arg1: i32) -> (i32, i32) {
    %c0_i32 = arith.constant 0 : i32
    return %arg1, %arg0 : i32, i32
  }
  func.func @transform_2(%arg0: i32, %arg1: i32) -> (i32, i32) {
    %c0_i32 = arith.constant 0 : i32
    %c0_i32_0 = arith.constant 0 : i32
    return %c0_i32, %arg0 : i32, i32
  }
  func.func @transform_3(%arg0: i32, %arg1: i32) -> (i32, i32) {
    %c0_i32 = arith.constant 0 : i32
    %c0_i32_0 = arith.constant 0 : i32
    return %c0_i32, %arg0 : i32, i32
  }
}

</mosaic_0001>

<llo_original>
// kernel: bev2rv_forward.1
$region0: #{bev2rv_forward.1}
  #allocation0 [shape = 'u32[]', space=smem, size = 0x4, offset = 0x4, fixed_abs, tag = 'smem constant byte address 0x4 - core index']
  #allocation1 [shape = 'u32[144,128]{1,0:T(1,128)}', space=vmem, size = 0x12000, scoped, tag = 'internal scratch']
  %s0 = inlined_call_operand.vmem [shape: bf16[16,256], index: 0, kind: input, shape index: {}]
  %s1 = inlined_call_operand.vmem [shape: f32[16,128], index: 1, kind: input, shape index: {}]
  %s2 = inlined_call_operand.vmem [shape: f32[16,128], index: 2, kind: input, shape index: {}]
  %s3 = inlined_call_operand.vmem [shape: f32[16,128], index: 3, kind: output, shape index: {}]
  %s4 = sld [smem:[#allocation0]]
  $region26: #{bev2rv_forward.1} parent=0
    _
  %s6 = ssub.s32 1, %s4
  %s7 = scalar_select 0, %s6, %s4
  // Predicated region
  $region2: #{bev2rv_forward.1} parent=0 // pred_check
    _
  $region3: #{bev2rv_forward.1} parent=0 // pred_check_branch
    %9 = sbr.rel (0) target = $region5
  $region4: #{bev2rv_forward.1} parent=0 // pred_region
    _
  $region5: #{bev2rv_forward.1} parent=0 // pred_fallthru
    _
  // Predicated region
  $region6: #{bev2rv_forward.1} parent=0 // pred_check
    _
  $region7: #{bev2rv_forward.1} parent=0 // pred_check_branch
    %11 = sbr.rel (0) target = $region9
  $region8: #{bev2rv_forward.1} parent=0 // pred_region
    _
  $region9: #{bev2rv_forward.1} parent=0 // pred_fallthru
    _
  // Predicated region
  $region10: #{bev2rv_forward.1} parent=0 // pred_check
    _
  $region11: #{bev2rv_forward.1} parent=0 // pred_check_branch
    %13 = sbr.rel (0) target = $region13
  $region12: #{bev2rv_forward.1} parent=0 // pred_region
    _
  $region13: #{bev2rv_forward.1} parent=0 // pred_fallthru
    _
  %p15 = scmp.eq.s32.totalorder 0, 0
  // Predicated region
  $region14: #{bev2rv_forward.1} parent=0 // pred_check
    %p16 = pneg %p15
  $region15: #{bev2rv_forward.1} parent=0 // pred_check_branch
    %18 = sbr.rel (%p16) target = $region17
  $region16: #{bev2rv_forward.1} parent=0 // pred_region
    %19 = vst [vmem:[%s3] sm:$0xff] 0.0
    %20 = vst [vmem:[%s3 + $0x8] sm:$0xff] 0.0
  $region17: #{bev2rv_forward.1} parent=0 // pred_fallthru
    _
  %v21 = vld [vmem:[%s1] sm:$0xff]
  %v22 = vld [vmem:[%s1 + $0x8] sm:$0xff]
  %v23 = vld [vmem:[%s2] sm:$0xff]
  %v24 = vld [vmem:[%s2 + $0x8] sm:$0xff]
  %v27 = vcombine.high %v21, %v21
  %v29 = vunpack.c.l.s4 1966171168
  %v30 = vunpack.c.0.s8 %v29
  %v31 = vlaneseq
  %v32 = vshrl.u32 %v31, 7
  %v33 = vsub.s32 %v30, %v32
  %v34 = vrot.slane %v21, %v33
  %v36 = vunpack.c.l.s4 1966171168
  %v37 = vunpack.c.0.s8 %v36
  %v38 = vlaneseq
  %v39 = vshrl.u32 %v38, 7
  %v40 = vsub.s32 %v37, %v39
  %v41 = vrot.slane %v27, %v40
  %v42 = vcombine.high %v34, %v34
  %v43 = vcombine.high %v41, %v41
  %v45 = vunpack.c.l.s4 1966171168
  %v46 = vunpack.c.0.s8 %v45
  %v47 = vlaneseq
  %v48 = vshrl.u32 %v47, 7
  %v49 = vsub.s32 %v46, %v48
  %v50 = vrot.slane %v34, %v49
  %v52 = vunpack.c.l.s4 1966171168
  %v53 = vunpack.c.0.s8 %v52
  %v54 = vlaneseq
  %v55 = vshrl.u32 %v54, 7
  %v56 = vsub.s32 %v53, %v55
  %v57 = vrot.slane %v41, %v56
  %v59 = vunpack.c.l.s4 1966171168
  %v60 = vunpack.c.0.s8 %v59
  %v61 = vlaneseq
  %v62 = vshrl.u32 %v61, 7
  %v63 = vsub.s32 %v60, %v62
  %v64 = vrot.slane %v42, %v63
  %v66 = vunpack.c.l.s4 1966171168
  %v67 = vunpack.c.0.s8 %v66
  %v68 = vlaneseq
  %v69 = vshrl.u32 %v68, 7
  %v70 = vsub.s32 %v67, %v69
  %v71 = vrot.slane %v43, %v70
  %v72 = vcombine.high %v50, %v50
  %v73 = vcombine.high %v57, %v57
  %v74 = vcombine.high %v64, %v64
  %v75 = vcombine.high %v71, %v71
  %v76 = vcombine.high %v22, %v22
  %v78 = vunpack.c.l.s4 1966171168
  %v79 = vunpack.c.0.s8 %v78
  %v80 = vlaneseq
  %v81 = vshrl.u32 %v80, 7
  %v82 = vsub.s32 %v79, %v81
  %v83 = vrot.slane %v22, %v82
  %v85 = vunpack.c.l.s4 1966171168
  %v86 = vunpack.c.0.s8 %v85
  %v87 = vlaneseq
  %v88 = vshrl.u32 %v87, 7
  %v89 = vsub.s32 %v86, %v88
  %v90 = vrot.slane %v76, %v89
  %v91 = vcombine.high %v83, %v83
  %v92 = vcombine.high %v90, %v90
  %v94 = vunpack.c.l.s4 1966171168
  %v95 = vunpack.c.0.s8 %v94
  %v96 = vlaneseq
  %v97 = vshrl.u32 %v96, 7
  %v98 = vsub.s32 %v95, %v97
  %v99 = vrot.slane %v83, %v98
  %v101 = vunpack.c.l.s4 1966171168
  %v102 = vunpack.c.0.s8 %v101
  %v103 = vlaneseq
  %v104 = vshrl.u32 %v103, 7
  %v105 = vsub.s32 %v102, %v104
  %v106 = vrot.slane %v90, %v105
  %v108 = vunpack.c.l.s4 1966171168
  %v109 = vunpack.c.0.s8 %v108
  %v110 = vlaneseq
  %v111 = vshrl.u32 %v110, 7
  %v112 = vsub.s32 %v109, %v111
  %v113 = vrot.slane %v91, %v112
  %v115 = vunpack.c.l.s4 1966171168
  %v116 = vunpack.c.0.s8 %v115
  %v117 = vlaneseq
  %v118 = vshrl.u32 %v117, 7
  %v119 = vsub.s32 %v116, %v118
  %v120 = vrot.slane %v92, %v119
  %v121 = vcombine.high %v99, %v99
  %v122 = vcombine.high %v106, %v106
  %v123 = vcombine.high %v113, %v113
  %v124 = vcombine.high %v120, %v120
  %v125 = vlaneseq
  %v126 = vshrl.u32 %v125, 7
  %v127 = vsub.s32 0, %v126
  %v128 = vrot.slane %v50, %v127
  %v129 = vlaneseq
  %v130 = vshrl.u32 %v129, 7
  %v131 = vsub.s32 0, %v130
  %v132 = vrot.slane %v64, %v131
  %v133 = vlaneseq
  %v134 = vshrl.u32 %v133, 7
  %v135 = vsub.s32 0, %v134
  %v136 = vrot.slane %v72, %v135
  %v137 = vlaneseq
  %v138 = vshrl.u32 %v137, 7
  %v139 = vsub.s32 0, %v138
  %v140 = vrot.slane %v74, %v139
  %v141 = vlaneseq
  %v142 = vshrl.u32 %v141, 7
  %v143 = vsub.s32 0, %v142
  %v144 = vrot.slane %v57, %v143
  %v145 = vlaneseq
  %v146 = vshrl.u32 %v145, 7
  %v147 = vsub.s32 0, %v146
  %v148 = vrot.slane %v71, %v147
  %v149 = vlaneseq
  %v150 = vshrl.u32 %v149, 7
  %v151 = vsub.s32 0, %v150
  %v152 = vrot.slane %v73, %v151
  %v153 = vlaneseq
  %v154 = vshrl.u32 %v153, 7
  %v155 = vsub.s32 0, %v154
  %v156 = vrot.slane %v75, %v155
  %v157 = vlaneseq
  %v158 = vshrl.u32 %v157, 7
  %v159 = vsub.s32 0, %v158
  %v160 = vrot.slane %v99, %v159
  %v161 = vlaneseq
  %v162 = vshrl.u32 %v161, 7
  %v163 = vsub.s32 0, %v162
  %v164 = vrot.slane %v113, %v163
  %v165 = vlaneseq
  %v166 = vshrl.u32 %v165, 7
  %v167 = vsub.s32 0, %v166
  %v168 = vrot.slane %v121, %v167
  %v169 = vlaneseq
  %v170 = vshrl.u32 %v169, 7
  %v171 = vsub.s32 0, %v170
  %v172 = vrot.slane %v123, %v171
  %v173 = vlaneseq
  %v174 = vshrl.u32 %v173, 7
  %v175 = vsub.s32 0, %v174
  %v176 = vrot.slane %v106, %v175
  %v177 = vlaneseq
  %v178 = vshrl.u32 %v177, 7
  %v179 = vsub.s32 0, %v178
  %v180 = vrot.slane %v120, %v179
  %v181 = vlaneseq
  %v182 = vshrl.u32 %v181, 7
  %v183 = vsub.s32 0, %v182
  %v184 = vrot.slane %v122, %v183
  %v185 = vlaneseq
  %v186 = vshrl.u32 %v185, 7
  %v187 = vsub.s32 0, %v186
  %v188 = vrot.slane %v124, %v187
  %v205 = vmul.f32 %v128, %v23
  %v206 = vmul.f32 %v128, %v24
  %v207 = vmul.f32 %v132, %v23
  %v208 = vmul.f32 %v132, %v24
  %v209 = vmul.f32 %v136, %v23
  %v210 = vmul.f32 %v136, %v24
  %v211 = vmul.f32 %v140, %v23
  %v212 = vmul.f32 %v140, %v24
  %v213 = vmul.f32 %v144, %v23
  %v214 = vmul.f32 %v144, %v24
  %v215 = vmul.f32 %v148, %v23
  %v216 = vmul.f32 %v148, %v24
  %v217 = vmul.f32 %v152, %v23
  %v218 = vmul.f32 %v152, %v24
  %v219 = vmul.f32 %v156, %v23
  %v220 = vmul.f32 %v156, %v24
  %v221 = vmul.f32 %v160, %v23
  %v222 = vmul.f32 %v160, %v24
  %v223 = vmul.f32 %v164, %v23
  %v224 = vmul.f32 %v164, %v24
  %v225 = vmul.f32 %v168, %v23
  %v226 = vmul.f32 %v168, %v24
  %v227 = vmul.f32 %v172, %v23
  %v228 = vmul.f32 %v172, %v24
  %v229 = vmul.f32 %v176, %v23
  %v230 = vmul.f32 %v176, %v24
  %v231 = vmul.f32 %v180, %v23
  %v232 = vmul.f32 %v180, %v24
  %v233 = vmul.f32 %v184, %v23
  %v234 = vmul.f32 %v184, %v24
  %v235 = vmul.f32 %v188, %v23
  %v236 = vmul.f32 %v188, %v24
  %v237 = vld [vmem:[%s3] sm:$0xff]
  %v238 = vld [vmem:[%s3 + $0x8] sm:$0xff]
  %v239 = vld [vmem:[%s0] sm:$0xff]
  %v240 = vld [vmem:[%s0 + $0x8] sm:$0xff]
  %v241 = vpack.c.bf16 %v206, %v205
  %v242 = vpack.c.bf16 %v208, %v207
  %v243 = vpack.c.bf16 %v210, %v209
  %v244 = vpack.c.bf16 %v212, %v211
  %v245 = vpack.c.bf16 %v214, %v213
  %v246 = vpack.c.bf16 %v216, %v215
  %v247 = vpack.c.bf16 %v218, %v217
  %v248 = vpack.c.bf16 %v220, %v219
  %v249 = vpack.c.bf16 %v222, %v221
  %v250 = vpack.c.bf16 %v224, %v223
  %v251 = vpack.c.bf16 %v226, %v225
  %v252 = vpack.c.bf16 %v228, %v227
  %v253 = vpack.c.bf16 %v230, %v229
  %v254 = vpack.c.bf16 %v232, %v231
  %v255 = vpack.c.bf16 %v234, %v233
  %v256 = vpack.c.bf16 %v236, %v235
  %v259 = vunpack.c.l.b16 %v239
  %v260 = vunpack.c.h.b16 %v239
  %v261 = vunpack.c.l.b16 %v240
  %v262 = vunpack.c.h.b16 %v240
  %v263 = vpack.c.b16 %v261, %v259
  %v264 = vpack.c.b16 %v262, %v260
  %267 = vmatprep.subr.bf16.mxu0 0
  %268 = vmatpush1.bf16.msra.mxu0 %v241
  %269 = vmatprep.subr.bf16.mxu0 0
  %270 = vmatpush1.bf16.msra.mxu0 %v242
  %271 = vmatprep.subr.bf16.mxu0 0
  %272 = vmatpush1.bf16.msra.mxu0 %v243
  %273 = vmatprep.subr.bf16.mxu0 0
  %274 = vmatpush1.bf16.msra.mxu0 %v244
  %275 = vmatprep.subr.bf16.mxu0 0
  %276 = vmatpush1.bf16.msra.mxu0 %v245
  %277 = vmatprep.subr.bf16.mxu0 0
  %278 = vmatpush1.bf16.msra.mxu0 %v246
  %279 = vmatprep.subr.bf16.mxu0 0
  %280 = vmatpush1.bf16.msra.mxu0 %v247
  %281 = vmatprep.subr.bf16.mxu0 0
  %282 = vmatpush1.bf16.msra.mxu0 %v248
  %283 = vmatprep.subr.bf16.mxu0 0
  %284 = vmatpush1.bf16.msra.mxu0 %v249
  %285 = vmatprep.subr.bf16.mxu0 0
  %286 = vmatpush1.bf16.msra.mxu0 %v250
  %287 = vmatprep.subr.bf16.mxu0 0
  %288 = vmatpush1.bf16.msra.mxu0 %v251
  %289 = vmatprep.subr.bf16.mxu0 0
  %290 = vmatpush1.bf16.msra.mxu0 %v252
  %291 = vmatprep.subr.bf16.mxu0 0
  %292 = vmatpush1.bf16.msra.mxu0 %v253
  %293 = vmatprep.subr.bf16.mxu0 0
  %294 = vmatpush1.bf16.msra.mxu0 %v254
  %295 = vmatprep.subr.bf16.mxu0 0
  %296 = vmatpush1.bf16.msra.mxu0 %v255
  %297 = vmatprep.subr.bf16.mxu0 0
  %298 = vmatpush1.bf16.msra.mxu0 %v256
  %299 = vmatprep.mubr.bf16.mxu0 %v264
  %300 = vmatmul.mubr.bf16.gmra.mrb[0].mxu0 %v263
  %v301 = vpop.f32.mrb[0].mxu0
  %v302 = vadd.f32 0.0, %v301
  %v303 = vpop.f32.mrb[0].mxu0
  %v304 = vpop.f32.mrb[0].mxu0
  %v305 = vadd.f32 0.0, %v304
  %v306 = vpop.f32.mrb[0].mxu0
  %307 = vdwg.mxu0
  %v308 = vadd.f32 %v237, %v302
  %v309 = vadd.f32 %v238, %v305
  %310 = vst [vmem:[%s3] sm:$0xff] %v308
  %311 = vst [vmem:[%s3 + $0x8] sm:$0xff] %v309
  // Predicated region
  $region18: #{bev2rv_forward.1} parent=0 // pred_check
    _
  $region19: #{bev2rv_forward.1} parent=0 // pred_check_branch
    %313 = sbr.rel (0) target = $region21
  $region20: #{bev2rv_forward.1} parent=0 // pred_region
    _
  $region21: #{bev2rv_forward.1} parent=0 // pred_fallthru
    _
  // Predicated region
  $region22: #{bev2rv_forward.1} parent=0 // pred_check
    _
  $region23: #{bev2rv_forward.1} parent=0 // pred_check_branch
    %315 = sbr.rel (0) target = $region25
  $region24: #{bev2rv_forward.1} parent=0 // pred_region
    _
  $region25: #{bev2rv_forward.1} parent=0 // pred_fallthru
    _

</llo_original>
